<compile_context>
chip_gen: v7x
topology: tpu7x:2x2x1
jax: 0.10.0
libtpu: 0.0.40
codegen_flags: <defaults>
</compile_context>

<pallas_src>
import jax
import jax.numpy as jnp
from jax.experimental import pallas as pl
from jax.experimental.pallas import tpu as pltpu

_LANES = 128
_SUBLANES = 8


def _round_up(x, m):
    return (x + m - 1) // m * m


def _msle_partial_kernel(pred_ref, actual_ref, out_ref):
    p = pred_ref[...].astype(jnp.float32)
    a = actual_ref[...].astype(jnp.float32)
    d = jnp.log1p(p) - jnp.log1p(a)
    dd = d * d
    tile_rows = dd.shape[0]
    # Fold (tile_rows, 128) -> (tile_rows//8, 8, 128) and sum the leading axis:
    # splitting the leading axis is layout-free, and the reduction is pure
    # elementwise VPU adds into a single (8, 128) vreg partial.
    out_ref[...] = dd.reshape(tile_rows // _SUBLANES, _SUBLANES, _LANES).sum(axis=0)


def msle_loss(pred, actual, *, max_tile_rows=2048):
    assert pred.shape == actual.shape, (pred.shape, actual.shape)
    n = pred.size
    assert n > 0

    pred_f = pred.reshape(-1).astype(jnp.float32)
    actual_f = actual.reshape(-1).astype(jnp.float32)

    max_tile_rows = _round_up(max_tile_rows, _SUBLANES)
    rows = pl.cdiv(n, _LANES)
    tile_rows = min(max_tile_rows, _round_up(rows, _SUBLANES))
    rows_padded = _round_up(rows, tile_rows)
    padded_n = rows_padded * _LANES

    # Zero-pad both inputs identically -> padded elements contribute 0.
    if padded_n != n:
        pred_f = jnp.pad(pred_f, (0, padded_n - n))
        actual_f = jnp.pad(actual_f, (0, padded_n - n))

    pred2d = pred_f.reshape(rows_padded, _LANES)
    actual2d = actual_f.reshape(rows_padded, _LANES)

    num_blocks = rows_padded // tile_rows
    grid = (num_blocks,)

    partials = pl.pallas_call(
        _msle_partial_kernel,
        out_shape=jax.ShapeDtypeStruct((num_blocks * _SUBLANES, _LANES), jnp.float32),
        grid_spec=pltpu.PrefetchScalarGridSpec(
            num_scalar_prefetch=0,
            grid=grid,
            in_specs=[
                pl.BlockSpec((tile_rows, _LANES), lambda i: (i, 0)),
                pl.BlockSpec((tile_rows, _LANES), lambda i: (i, 0)),
            ],
            out_specs=pl.BlockSpec((_SUBLANES, _LANES), lambda i: (i, 0)),
        ),
        compiler_params=pltpu.CompilerParams(
            dimension_semantics=("parallel",),
            vmem_limit_bytes=64 * 1024 * 1024,
        ),
    )(pred2d, actual2d)

    # Tiny final cross-lane reduction + mean in plain JAX (f32).
    return jnp.sum(partials) / jnp.float32(n)


if __name__ == "__main__":
    key = jax.random.PRNGKey(0)
    k1, k2 = jax.random.split(key)

    # Small shapes consistent with a regression head: (batch=2, ch=4, 16, 16).
    shape = (2, 4, 16, 16)
    # MSLE expects non-negative inputs (log(x+1)); use uniform positives.
    pred = jax.random.uniform(k1, shape, dtype=jnp.float32, minval=0.0, maxval=5.0)
    actual = jax.random.uniform(k2, shape, dtype=jnp.float32, minval=0.0, maxval=5.0)

    loss = msle_loss(pred, actual)
    jax.block_until_ready(loss)

    # Reference check in plain JAX.
    ref = jnp.mean((jnp.log1p(pred) - jnp.log1p(actual)) ** 2)
    assert jnp.allclose(loss, ref, rtol=1e-5, atol=1e-6), (loss, ref)

    print("KERNEL_OK")
</pallas_src>

<mosaic_0001>
module attributes {stable_mosaic.version = 11 : i64} {
  func.func @_msle_partial_kernel(%arg0: i32, %arg1: memref<16x128xf32, #tpu.memory_space<vmem>>, %arg2: memref<16x128xf32, #tpu.memory_space<vmem>>, %arg3: memref<8x128xf32, #tpu.memory_space<vmem>>) attributes {dimension_semantics = [#tpu.dimension_semantics<parallel>], iteration_bounds = array<i64: 1>, scalar_prefetch = 0 : i64, scratch_operands = 0 : i64, tpu.core_type = #tpu.core_type<tc>, window_params = [{transform_indices = @transform_0, window_bounds = array<i64: 16, 128>}, {transform_indices = @transform_1, window_bounds = array<i64: 16, 128>}, {transform_indices = @transform_2, window_bounds = array<i64: 8, 128>}]} {
    %c0 = arith.constant 0 : index
    %c0_0 = arith.constant 0 : index
    %0 = vector.load %arg1[%c0, %c0_0] : memref<16x128xf32, #tpu.memory_space<vmem>>, vector<16x128xf32>
    %c0_1 = arith.constant 0 : index
    %c0_2 = arith.constant 0 : index
    %1 = vector.load %arg2[%c0_1, %c0_2] : memref<16x128xf32, #tpu.memory_space<vmem>>, vector<16x128xf32>
    %2 = math.log1p %0 : vector<16x128xf32>
    %3 = math.log1p %1 : vector<16x128xf32>
    %4 = arith.subf %2, %3 : vector<16x128xf32>
    %5 = arith.mulf %4, %4 : vector<16x128xf32>
    %6 = vector.shape_cast %5 : vector<16x128xf32> to vector<2x8x128xf32>
    %cst = arith.constant dense<0.000000e+00> : vector<8x128xf32>
    %7 = vector.multi_reduction <add>, %6, %cst [0] : vector<2x8x128xf32> to vector<8x128xf32>
    %c0_3 = arith.constant 0 : index
    %c0_4 = arith.constant 0 : index
    %8 = vector.load %arg3[%c0_3, %c0_4] : memref<8x128xf32, #tpu.memory_space<vmem>>, vector<8x128xf32>
    tpu.vector_store %arg3[%c0_3, %c0_4], %7 {strides = array<i32>} : memref<8x128xf32, #tpu.memory_space<vmem>>, vector<8x128xf32>,
    return
  }
  func.func @transform_0(%arg0: i32) -> (i32, i32) {
    %c0_i32 = arith.constant 0 : i32
    %c0_i32_0 = arith.constant 0 : i32
    return %arg0, %c0_i32 : i32, i32
  }
  func.func @transform_1(%arg0: i32) -> (i32, i32) {
    %c0_i32 = arith.constant 0 : i32
    %c0_i32_0 = arith.constant 0 : i32
    return %arg0, %c0_i32 : i32, i32
  }
  func.func @transform_2(%arg0: i32) -> (i32, i32) {
    %c0_i32 = arith.constant 0 : i32
    %c0_i32_0 = arith.constant 0 : i32
    return %arg0, %c0_i32 : i32, i32
  }
}

</mosaic_0001>

<llo_original>
// kernel: tpu_custom_call.1
$region0: #{tpu_custom_call.1}
  #allocation0 [shape = 'u32[]', space=smem, size = 0x4, offset = 0x4, fixed_abs, tag = 'smem constant byte address 0x4 - core index']
  #allocation1 [shape = 'u32[144,128]{1,0:T(1,128)}', space=vmem, size = 0x12000, scoped, tag = 'internal scratch']
  %s0 = inlined_call_operand.hbm [shape: f32[16,128], index: 0, kind: input, shape index: {}]
  %s1 = inlined_call_operand.hbm [shape: f32[16,128], index: 1, kind: input, shape index: {}]
  %s2 = inlined_call_operand.hbm [shape: f32[8,128], index: 2, kind: output, shape index: {}]
  %s3 = sld [smem:[#allocation0]]
  $region26: #{tpu_custom_call.1} parent=0
    _
  %s5 = ssub.s32 1, %s3
  %s6 = scalar_select 0, %s5, %s3
  $region1: #{tpu_custom_call.1} parent=0
    #allocation2 [shape = 'u8[8192]{0}', space=vmem, size = 0x2000, scoped, tag = 'input window, operand 0, single buffered']
    #allocation3 [shape = 's32[1]{0}', space=sflag, size = 0x4, scoped, tag = 'scoped memory for tpu_custom_call.1']
    #allocation4 [shape = 's32[1]{0}', space=sflag, size = 0x4, scoped, tag = 'scoped memory for tpu_custom_call.1']
    #allocation5 [shape = 'u8[8192]{0}', space=vmem, size = 0x2000, scoped, tag = 'input window, operand 1, single buffered']
    #allocation6 [shape = 's32[1]{0}', space=sflag, size = 0x4, scoped, tag = 'scoped memory for tpu_custom_call.1']
    #allocation7 [shape = 'u8[4096]{0}', space=vmem, size = 0x1000, scoped, tag = 'output window, operand 0, single buffered']
    %7 = vsyncpa [#allocation3], 0
    %8 = vsyncpa [#allocation6], 0
    %9 = vsyncpa [#allocation4], 0
    // Predicated region
    $region2: #{tpu_custom_call.1} parent=1 // pred_check
      _
    $region3: #{tpu_custom_call.1} parent=1 // pred_check_branch
      %11 = sbr.rel (0) target = $region5
    $region4: #{tpu_custom_call.1} parent=1 // pred_region
      %s13 = ssub.s32 256, 256
      %14 = vsyncadd [#allocation3], %s13
      %s15 = sshll.u32 [#allocation2], 4
      %s16 = int_to_ptr.vmem [resolvable:$true] %s15
      %21 = dma.hbm_to_vmem [thread:$0]  %s0, 256, %s16, [#allocation3], 128, 128, 8
    $region5: #{tpu_custom_call.1} parent=1 // pred_fallthru
      _
    // Predicated region
    $region6: #{tpu_custom_call.1} parent=1 // pred_check
      _
    $region7: #{tpu_custom_call.1} parent=1 // pred_check_branch
      %23 = sbr.rel (0) target = $region9
    $region8: #{tpu_custom_call.1} parent=1 // pred_region
      %s25 = ssub.s32 256, 256
      %26 = vsyncadd [#allocation6], %s25
      %s27 = sshll.u32 [#allocation5], 4
      %s28 = int_to_ptr.vmem [resolvable:$true] %s27
      %33 = dma.hbm_to_vmem [thread:$0]  %s1, 256, %s28, [#allocation6], 128, 128, 8
    $region9: #{tpu_custom_call.1} parent=1 // pred_fallthru
      _
    // Predicated region
    $region10: #{tpu_custom_call.1} parent=1 // pred_check
      _
    $region11: #{tpu_custom_call.1} parent=1 // pred_check_branch
      %35 = sbr.rel (0) target = $region13
    $region12: #{tpu_custom_call.1} parent=1 // pred_region
      %36 = dma.done [#allocation3], 256
    $region13: #{tpu_custom_call.1} parent=1 // pred_fallthru
      _
    // Predicated region
    $region14: #{tpu_custom_call.1} parent=1 // pred_check
      _
    $region15: #{tpu_custom_call.1} parent=1 // pred_check_branch
      %38 = sbr.rel (0) target = $region17
    $region16: #{tpu_custom_call.1} parent=1 // pred_region
      %39 = dma.done [#allocation6], 256
    $region17: #{tpu_custom_call.1} parent=1 // pred_fallthru
      _
    %v40 = vld [vmem:[#allocation2] sm:$0xff]
    %v41 = vld [vmem:[#allocation2 + $0x8] sm:$0xff]
    %v42 = vld [vmem:[#allocation5] sm:$0xff]
    %v43 = vld [vmem:[#allocation5 + $0x8] sm:$0xff]
    %v44 = vadd.f32 %v40, 1.0
    %v45 = vlog2.pop %v44
    %v46 = vmul.f32 %v45, 0.6931472
    %v47 = vmul.f32 -0.5, %v40
    %v48 = vadd.f32 %v47, 1.0
    %v49 = vmul.f32 %v48, %v40
    %v50 = vand.u32 2147483647, %v40
    %vm51 = vcmp.lt.f32.partialorder %v50, 0.0004427343
    %v52 = vsel %vm51, %v49, %v46
    %v53 = vadd.f32 %v41, 1.0
    %v54 = vlog2.pop %v53
    %v55 = vmul.f32 %v54, 0.6931472
    %v56 = vmul.f32 -0.5, %v41
    %v57 = vadd.f32 %v56, 1.0
    %v58 = vmul.f32 %v57, %v41
    %v59 = vand.u32 2147483647, %v41
    %vm60 = vcmp.lt.f32.partialorder %v59, 0.0004427343
    %v61 = vsel %vm60, %v58, %v55
    %v62 = vadd.f32 %v42, 1.0
    %v63 = vlog2.pop %v62
    %v64 = vmul.f32 %v63, 0.6931472
    %v65 = vmul.f32 -0.5, %v42
    %v66 = vadd.f32 %v65, 1.0
    %v67 = vmul.f32 %v66, %v42
    %v68 = vand.u32 2147483647, %v42
    %vm69 = vcmp.lt.f32.partialorder %v68, 0.0004427343
    %v70 = vsel %vm69, %v67, %v64
    %v71 = vadd.f32 %v43, 1.0
    %v72 = vlog2.pop %v71
    %v73 = vmul.f32 %v72, 0.6931472
    %v74 = vmul.f32 -0.5, %v43
    %v75 = vadd.f32 %v74, 1.0
    %v76 = vmul.f32 %v75, %v43
    %v77 = vand.u32 2147483647, %v43
    %vm78 = vcmp.lt.f32.partialorder %v77, 0.0004427343
    %v79 = vsel %vm78, %v76, %v73
    %v80 = vsub.f32 %v52, %v70
    %v81 = vsub.f32 %v61, %v79
    %v82 = vmul.f32 %v80, %v80
    %v83 = vmul.f32 %v81, %v81
    %v84 = vadd.f32 %v82, %v83
    %85 = vst [vmem:[#allocation7] sm:$0xff] %v84
    // Predicated region
    $region18: #{tpu_custom_call.1} parent=1 // pred_check
      _
    $region19: #{tpu_custom_call.1} parent=1 // pred_check_branch
      %87 = sbr.rel (0) target = $region21
    $region20: #{tpu_custom_call.1} parent=1 // pred_region
      %s89 = ssub.s32 128, 128
      %90 = vsyncadd [#allocation4], %s89
      %s92 = sshll.u32 [#allocation7], 4
      %s93 = int_to_ptr.vmem [resolvable:$true] %s92
      %95 = dma.vmem_to_hbm [thread:$0]  %s93, 128, %s2, [#allocation4]
    $region21: #{tpu_custom_call.1} parent=1 // pred_fallthru
      _
    // Predicated region
    $region22: #{tpu_custom_call.1} parent=1 // pred_check
      _
    $region23: #{tpu_custom_call.1} parent=1 // pred_check_branch
      %97 = sbr.rel (0) target = $region25
    $region24: #{tpu_custom_call.1} parent=1 // pred_region
      %98 = dma.done [#allocation4], 128
    $region25: #{tpu_custom_call.1} parent=1 // pred_fallthru
      _
    %99 = vsyncpa [#allocation3], 1
    %100 = vsyncpa [#allocation6], 1
    %101 = vsyncpa [#allocation4], 1

</llo_original>
